<compile_context>
chip_gen: v6e
topology: v6e:2x2x1
jax: 0.10.0
libtpu: 0.0.40
codegen_flags: <defaults>
</compile_context>

<pallas_src>
import jax
import jax.numpy as jnp
from jax.experimental import pallas as pl
from jax.experimental.pallas import tpu as pltpu

BOARD_SIZE = 10
IN_DIM = BOARD_SIZE * BOARD_SIZE    # 100
HIDDEN = 128
OUT_DIM = BOARD_SIZE * BOARD_SIZE   # 100


def _round_up(x, m):
    return ((x + m - 1) // m) * m


def _has_bf16_vpu():
    """bf16 VALU exists on v6e/v7x; v5e/v5p fall back to an f32 epilogue."""
    try:
        kind = jax.devices()[0].device_kind.lower()
    except Exception:
        return True
    return "v5" not in kind


def _mlp_kernel(x_ref, w1_ref, b1_ref, w2_ref, b2_ref, w3_ref, b3_ref, o_ref):
    """Fused 3-layer MLP for one batch tile.

    Matmuls: bf16 operands into the MXU, f32 accumulation.
    Bias+ReLU epilogue: runs in the dtype of the prepared biases
    (bf16 on v6e/v7x -> 2 elems per 32-bit VPU lane; f32 on v5e).
    """
    epi = b1_ref.dtype

    h1 = jnp.dot(x_ref[...], w1_ref[...], preferred_element_type=jnp.float32)
    h1 = jnp.maximum(h1.astype(epi) + b1_ref[...], 0.0).astype(jnp.bfloat16)

    h2 = jnp.dot(h1, w2_ref[...], preferred_element_type=jnp.float32)
    h2 = jnp.maximum(h2.astype(epi) + b2_ref[...], 0.0).astype(jnp.bfloat16)

    out = jnp.dot(h2, w3_ref[...], preferred_element_type=jnp.float32)
    o_ref[...] = (out + b3_ref[...]).astype(o_ref.dtype)


def prepare_params(params, *, bf16_epilogue=None):
    """One-time parameter prep (hoisted out of the per-call forward).

    Weights -> bf16 (MXU operands, halves resident weight bytes).
    b1/b2   -> epilogue dtype (bf16 on v6e/v7x, f32 on v5e).
    b3      -> f32 (final logits stay f32-accurate).
    """
    if bf16_epilogue is None:
        bf16_epilogue = _has_bf16_vpu()
    epi = jnp.bfloat16 if bf16_epilogue else jnp.float32
    return {
        "w1": params["w1"].astype(jnp.bfloat16),                    # (100, 128)
        "b1": params["b1"].reshape(1, HIDDEN).astype(epi),
        "w2": params["w2"].astype(jnp.bfloat16),                    # (128, 128)
        "b2": params["b2"].reshape(1, HIDDEN).astype(epi),
        "w3": params["w3"].astype(jnp.bfloat16),                    # (128, 100)
        "b3": params["b3"].reshape(1, OUT_DIM).astype(jnp.float32),
    }


def tictactoe_net_forward(x, prepared, *, tile_b=2048, out_dtype=jnp.float32):
    """x: (B, 100); prepared: output of prepare_params(). Returns (B, 100)."""
    B = x.shape[0]

    # Activations DMA'd as bf16 (dominant HBM term); cast happens once here
    # (ideally the producer already emits bf16 and this is a no-op).
    if x.dtype != jnp.bfloat16:
        x = x.astype(jnp.bfloat16)

    # Batch tile: big (amortizes ~0.35us/step pipeline overhead) but capped at
    # ~ceil(B/2) so larger batches get >= 2 grid steps (v7x dual-TC sharding).
    tb = max(8, min(tile_b, _round_up(pl.cdiv(B, 2), 8)))
    grid = (pl.cdiv(B, tb),)   # ragged last block: reads padded, writes masked

    flops = 2 * B * (IN_DIM * HIDDEN + HIDDEN * HIDDEN + HIDDEN * OUT_DIM)
    bytes_accessed = int(
        B * IN_DIM * 2                                   # x in (bf16)
        + B * OUT_DIM * jnp.dtype(out_dtype).itemsize    # out
        + sum(int(v.size) * v.dtype.itemsize for v in prepared.values()))

    return pl.pallas_call(
        _mlp_kernel,
        out_shape=jax.ShapeDtypeStruct((B, OUT_DIM), out_dtype),
        grid=grid,
        in_specs=[
            pl.BlockSpec((tb, IN_DIM), lambda i: (i, 0)),       # x tile
            pl.BlockSpec((IN_DIM, HIDDEN), lambda i: (0, 0)),   # w1 (VMEM-resident)
            pl.BlockSpec((1, HIDDEN), lambda i: (0, 0)),        # b1
            pl.BlockSpec((HIDDEN, HIDDEN), lambda i: (0, 0)),   # w2
            pl.BlockSpec((1, HIDDEN), lambda i: (0, 0)),        # b2
            pl.BlockSpec((HIDDEN, OUT_DIM), lambda i: (0, 0)),  # w3
            pl.BlockSpec((1, OUT_DIM), lambda i: (0, 0)),       # b3
        ],
        out_specs=pl.BlockSpec((tb, OUT_DIM), lambda i: (i, 0)),
        compiler_params=pltpu.CompilerParams(
            dimension_semantics=("parallel",)),
        cost_estimate=pl.CostEstimate(
            flops=flops, transcendentals=0, bytes_accessed=bytes_accessed),
    )(x, prepared["w1"], prepared["b1"], prepared["w2"], prepared["b2"],
      prepared["w3"], prepared["b3"])


def init_params(key):
    """PyTorch nn.Linear-style init: U(-1/sqrt(fan_in), +1/sqrt(fan_in))."""
    ks = jax.random.split(key, 6)

    def linear(kw, kb, fan_in, fan_out):
        bound = 1.0 / jnp.sqrt(jnp.float32(fan_in))
        w = jax.random.uniform(kw, (fan_in, fan_out), jnp.float32, -bound, bound)
        b = jax.random.uniform(kb, (1, fan_out), jnp.float32, -bound, bound)
        return w, b

    w1, b1 = linear(ks[0], ks[1], IN_DIM, HIDDEN)
    w2, b2 = linear(ks[2], ks[3], HIDDEN, HIDDEN)
    w3, b3 = linear(ks[4], ks[5], HIDDEN, OUT_DIM)
    return {"w1": w1, "b1": b1, "w2": w2, "b2": b2, "w3": w3, "b3": b3}


def reference_forward_f32(x, p):
    h1 = jnp.maximum(x @ p["w1"] + p["b1"], 0.0)
    h2 = jnp.maximum(h1 @ p["w2"] + p["b2"], 0.0)
    return h2 @ p["w3"] + p["b3"]


def reference_forward_kernel_path(x, prepared):
    """Mirrors the kernel's exact dtype path (tight-tolerance check)."""
    epi = prepared["b1"].dtype
    xb = x.astype(jnp.bfloat16)
    h1 = jnp.dot(xb, prepared["w1"], preferred_element_type=jnp.float32)
    h1 = jnp.maximum(h1.astype(epi) + prepared["b1"], 0.0).astype(jnp.bfloat16)
    h2 = jnp.dot(h1, prepared["w2"], preferred_element_type=jnp.float32)
    h2 = jnp.maximum(h2.astype(epi) + prepared["b2"], 0.0).astype(jnp.bfloat16)
    out = jnp.dot(h2, prepared["w3"], preferred_element_type=jnp.float32)
    return out + prepared["b3"]


if __name__ == "__main__":
    key = jax.random.PRNGKey(0)
    kx, kp, kx2, kx3 = jax.random.split(key, 4)
    params = init_params(kp)
    prepared = prepare_params(params)   # one-time prep, outside the forward

    fwd = jax.jit(tictactoe_net_forward, static_argnames=("tile_b", "out_dtype"))

    # Small batch (matches the original example): single grid step.
    B = 8
    x = jax.random.normal(kx, (B, IN_DIM), jnp.float32)
    out = jax.block_until_ready(fwd(x, prepared))
    assert out.shape == (B, OUT_DIM), out.shape
    assert jnp.allclose(out, reference_forward_kernel_path(x, prepared),
                        atol=2e-3, rtol=2e-3), "mismatch vs kernel-path reference"
    assert jnp.allclose(out, reference_forward_f32(x, params),
                        atol=5e-2, rtol=5e-2), "mismatch vs f32 reference"

    # Larger batch with a ragged last block (272 rows, tile 128 -> 3 grid steps).
    B2 = 272
    x2 = jax.random.normal(kx2, (B2, IN_DIM), jnp.float32)
    out2 = jax.block_until_ready(fwd(x2, prepared, tile_b=128))
    assert out2.shape == (B2, OUT_DIM), out2.shape
    assert jnp.allclose(out2, reference_forward_kernel_path(x2, prepared),
                        atol=2e-3, rtol=2e-3)

    # Odd batch with the default tile policy (tb = ceil(B/2) rounded to 8).
    B3 = 37
    x3 = jax.random.normal(kx3, (B3, IN_DIM), jnp.float32)
    out3 = jax.block_until_ready(fwd(x3, prepared))
    assert out3.shape == (B3, OUT_DIM), out3.shape
    assert jnp.allclose(out3, reference_forward_kernel_path(x3, prepared),
                        atol=2e-3, rtol=2e-3)

    print("KERNEL_OK")
</pallas_src>

<mosaic_0001>
module attributes {stable_mosaic.version = 11 : i64} {
  func.func @_mlp_kernel(%arg0: i32, %arg1: memref<8x100xbf16, #tpu.memory_space<vmem>>, %arg2: memref<100x128xbf16, #tpu.memory_space<vmem>>, %arg3: memref<1x128xbf16, #tpu.memory_space<vmem>>, %arg4: memref<128x128xbf16, #tpu.memory_space<vmem>>, %arg5: memref<1x128xbf16, #tpu.memory_space<vmem>>, %arg6: memref<128x100xbf16, #tpu.memory_space<vmem>>, %arg7: memref<1x100xf32, #tpu.memory_space<vmem>>, %arg8: memref<8x100xf32, #tpu.memory_space<vmem>>) attributes {dimension_semantics = [#tpu.dimension_semantics<parallel>], iteration_bounds = array<i64: 1>, scalar_prefetch = 0 : i64, scratch_operands = 0 : i64, tpu.core_type = #tpu.core_type<tc>, window_params = [{transform_indices = @transform_0, window_bounds = array<i64: 8, 100>}, {pipeline_mode = #tpu.pipeline_mode<synchronous>, transform_indices = @transform_1, window_bounds = array<i64: 100, 128>}, {pipeline_mode = #tpu.pipeline_mode<synchronous>, transform_indices = @transform_2, window_bounds = array<i64: 1, 128>}, {pipeline_mode = #tpu.pipeline_mode<synchronous>, transform_indices = @transform_3, window_bounds = array<i64: 128, 128>}, {pipeline_mode = #tpu.pipeline_mode<synchronous>, transform_indices = @transform_4, window_bounds = array<i64: 1, 128>}, {pipeline_mode = #tpu.pipeline_mode<synchronous>, transform_indices = @transform_5, window_bounds = array<i64: 128, 100>}, {pipeline_mode = #tpu.pipeline_mode<synchronous>, transform_indices = @transform_6, window_bounds = array<i64: 1, 100>}, {transform_indices = @transform_7, window_bounds = array<i64: 8, 100>}]} {
    %c0 = arith.constant 0 : index
    %c0_0 = arith.constant 0 : index
    %0 = vector.load %arg1[%c0, %c0_0] : memref<8x100xbf16, #tpu.memory_space<vmem>>, vector<8x100xbf16>
    %c0_1 = arith.constant 0 : index
    %c0_2 = arith.constant 0 : index
    %1 = vector.load %arg2[%c0_1, %c0_2] : memref<100x128xbf16, #tpu.memory_space<vmem>>, vector<100x128xbf16>
    %cst = arith.constant dense<0.000000e+00> : vector<8x128xf32>
    %2 = tpu.matmul %0, %1, %cst {dimension_numbers = #tpu.dot_dimension_numbers<[1], [0], [0], [1], [0, 0, 1, 1], [], []>} : vector<8x100xbf16>, vector<100x128xbf16>, vector<8x128xf32> -> vector<8x128xf32>
    %3 = arith.truncf %2 : vector<8x128xf32> to vector<8x128xbf16>
    %c0_3 = arith.constant 0 : index
    %c0_4 = arith.constant 0 : index
    %4 = vector.load %arg3[%c0_3, %c0_4] : memref<1x128xbf16, #tpu.memory_space<vmem>>, vector<1x128xbf16>
    %5 = vector.broadcast %4 : vector<1x128xbf16> to vector<8x128xbf16>
    %6 = arith.addf %3, %5 : vector<8x128xbf16>
    %cst_5 = arith.constant 0.000000e+00 : bf16
    %7 = vector.broadcast %cst_5 : bf16 to vector<8x128xbf16>
    %8 = arith.maximumf %6, %7 : vector<8x128xbf16>
    %c0_6 = arith.constant 0 : index
    %c0_7 = arith.constant 0 : index
    %9 = vector.load %arg4[%c0_6, %c0_7] : memref<128x128xbf16, #tpu.memory_space<vmem>>, vector<128x128xbf16>
    %cst_8 = arith.constant dense<0.000000e+00> : vector<8x128xf32>
    %10 = tpu.matmul %8, %9, %cst_8 {dimension_numbers = #tpu.dot_dimension_numbers<[1], [0], [0], [1], [0, 0, 1, 1], [], []>} : vector<8x128xbf16>, vector<128x128xbf16>, vector<8x128xf32> -> vector<8x128xf32>
    %11 = arith.truncf %10 : vector<8x128xf32> to vector<8x128xbf16>
    %c0_9 = arith.constant 0 : index
    %c0_10 = arith.constant 0 : index
    %12 = vector.load %arg5[%c0_9, %c0_10] : memref<1x128xbf16, #tpu.memory_space<vmem>>, vector<1x128xbf16>
    %13 = vector.broadcast %12 : vector<1x128xbf16> to vector<8x128xbf16>
    %14 = arith.addf %11, %13 : vector<8x128xbf16>
    %cst_11 = arith.constant 0.000000e+00 : bf16
    %15 = vector.broadcast %cst_11 : bf16 to vector<8x128xbf16>
    %16 = arith.maximumf %14, %15 : vector<8x128xbf16>
    %c0_12 = arith.constant 0 : index
    %c0_13 = arith.constant 0 : index
    %17 = vector.load %arg6[%c0_12, %c0_13] : memref<128x100xbf16, #tpu.memory_space<vmem>>, vector<128x100xbf16>
    %cst_14 = arith.constant dense<0.000000e+00> : vector<8x100xf32>
    %18 = tpu.matmul %16, %17, %cst_14 {dimension_numbers = #tpu.dot_dimension_numbers<[1], [0], [0], [1], [0, 0, 1, 1], [], []>} : vector<8x128xbf16>, vector<128x100xbf16>, vector<8x100xf32> -> vector<8x100xf32>
    %c0_15 = arith.constant 0 : index
    %c0_16 = arith.constant 0 : index
    %19 = vector.load %arg7[%c0_15, %c0_16] : memref<1x100xf32, #tpu.memory_space<vmem>>, vector<1x100xf32>
    %20 = vector.broadcast %19 : vector<1x100xf32> to vector<8x100xf32>
    %21 = arith.addf %18, %20 : vector<8x100xf32>
    %c0_17 = arith.constant 0 : index
    %c0_18 = arith.constant 0 : index
    %22 = vector.load %arg8[%c0_17, %c0_18] : memref<8x100xf32, #tpu.memory_space<vmem>>, vector<8x100xf32>
    tpu.vector_store %arg8[%c0_17, %c0_18], %21 {strides = array<i32>} : memref<8x100xf32, #tpu.memory_space<vmem>>, vector<8x100xf32>,
    return
  }
  func.func @transform_0(%arg0: i32) -> (i32, i32) {
    %c0_i32 = arith.constant 0 : i32
    %c0_i32_0 = arith.constant 0 : i32
    return %arg0, %c0_i32 : i32, i32
  }
  func.func @transform_1(%arg0: i32) -> (i32, i32) {
    %c0_i32 = arith.constant 0 : i32
    %c0_i32_0 = arith.constant 0 : i32
    %c0_i32_1 = arith.constant 0 : i32
    return %c0_i32, %c0_i32_0 : i32, i32
  }
  func.func @transform_2(%arg0: i32) -> (i32, i32) {
    %c0_i32 = arith.constant 0 : i32
    %c0_i32_0 = arith.constant 0 : i32
    %c0_i32_1 = arith.constant 0 : i32
    return %c0_i32, %c0_i32_0 : i32, i32
  }
  func.func @transform_3(%arg0: i32) -> (i32, i32) {
    %c0_i32 = arith.constant 0 : i32
    %c0_i32_0 = arith.constant 0 : i32
    %c0_i32_1 = arith.constant 0 : i32
    return %c0_i32, %c0_i32_0 : i32, i32
  }
  func.func @transform_4(%arg0: i32) -> (i32, i32) {
    %c0_i32 = arith.constant 0 : i32
    %c0_i32_0 = arith.constant 0 : i32
    %c0_i32_1 = arith.constant 0 : i32
    return %c0_i32, %c0_i32_0 : i32, i32
  }
  func.func @transform_5(%arg0: i32) -> (i32, i32) {
    %c0_i32 = arith.constant 0 : i32
    %c0_i32_0 = arith.constant 0 : i32
    %c0_i32_1 = arith.constant 0 : i32
    return %c0_i32, %c0_i32_0 : i32, i32
  }
  func.func @transform_6(%arg0: i32) -> (i32, i32) {
    %c0_i32 = arith.constant 0 : i32
    %c0_i32_0 = arith.constant 0 : i32
    %c0_i32_1 = arith.constant 0 : i32
    return %c0_i32, %c0_i32_0 : i32, i32
  }
  func.func @transform_7(%arg0: i32) -> (i32, i32) {
    %c0_i32 = arith.constant 0 : i32
    %c0_i32_0 = arith.constant 0 : i32
    return %arg0, %c0_i32 : i32, i32
  }
}

</mosaic_0001>

<llo_original>
// kernel: tictactoe_net_forward.1
$region0: #{tictactoe_net_forward.1}
  #allocation0 [shape = 'u32[]', space=smem, size = 0x4, offset = 0x4, fixed_abs, tag = 'smem constant byte address 0x4 - core index']
  #allocation1 [shape = 'u32[144,128]{1,0:T(1,128)}', space=vmem, size = 0x12000, scoped, tag = 'internal scratch']
  %s0 = inlined_call_operand.vmem [shape: bf16[8,100], index: 0, kind: input, shape index: {}]
  %s1 = inlined_call_operand.vmem [shape: bf16[100,128], index: 1, kind: input, shape index: {}]
  %s2 = inlined_call_operand.vmem [shape: bf16[1,128], index: 2, kind: input, shape index: {}]
  %s3 = inlined_call_operand.vmem [shape: bf16[128,128], index: 3, kind: input, shape index: {}]
  %s4 = inlined_call_operand.vmem [shape: bf16[1,128], index: 4, kind: input, shape index: {}]
  %s5 = inlined_call_operand.vmem [shape: bf16[128,100], index: 5, kind: input, shape index: {}]
  %s6 = inlined_call_operand.vmem [shape: f32[1,100], index: 6, kind: input, shape index: {}]
  %s7 = inlined_call_operand.hbm [shape: f32[8,100], index: 7, kind: output, shape index: {}]
  %s8 = sld [smem:[#allocation0]]
  $region38: #{tictactoe_net_forward.1} parent=0
    _
  %s10 = ssub.s32 1, %s8
  %s11 = scalar_select 0, %s10, %s8
  $region1: #{tictactoe_net_forward.1} parent=0
    #allocation2 [shape = 'u8[4096]{0}', space=vmem, size = 0x1000, scoped, tag = 'output window, operand 0, single buffered']
    #allocation3 [shape = 's32[1]{0}', space=sflag, size = 0x4, scoped, tag = 'scoped memory for tictactoe_net_forward.1']
    %12 = vsyncpa [#allocation3], 0
    // Predicated region
    $region2: #{tictactoe_net_forward.1} parent=1 // pred_check
      _
    $region3: #{tictactoe_net_forward.1} parent=1 // pred_check_branch
      %14 = sbr.rel (0) target = $region5
    $region4: #{tictactoe_net_forward.1} parent=1 // pred_region
      _
    $region5: #{tictactoe_net_forward.1} parent=1 // pred_fallthru
      _
    // Predicated region
    $region6: #{tictactoe_net_forward.1} parent=1 // pred_check
      _
    $region7: #{tictactoe_net_forward.1} parent=1 // pred_check_branch
      %16 = sbr.rel (0) target = $region9
    $region8: #{tictactoe_net_forward.1} parent=1 // pred_region
      _
    $region9: #{tictactoe_net_forward.1} parent=1 // pred_fallthru
      _
    // Predicated region
    $region10: #{tictactoe_net_forward.1} parent=1 // pred_check
      _
    $region11: #{tictactoe_net_forward.1} parent=1 // pred_check_branch
      %18 = sbr.rel (0) target = $region13
    $region12: #{tictactoe_net_forward.1} parent=1 // pred_region
      _
    $region13: #{tictactoe_net_forward.1} parent=1 // pred_fallthru
      _
    // Predicated region
    $region14: #{tictactoe_net_forward.1} parent=1 // pred_check
      _
    $region15: #{tictactoe_net_forward.1} parent=1 // pred_check_branch
      %20 = sbr.rel (0) target = $region17
    $region16: #{tictactoe_net_forward.1} parent=1 // pred_region
      _
    $region17: #{tictactoe_net_forward.1} parent=1 // pred_fallthru
      _
    // Predicated region
    $region18: #{tictactoe_net_forward.1} parent=1 // pred_check
      _
    $region19: #{tictactoe_net_forward.1} parent=1 // pred_check_branch
      %22 = sbr.rel (0) target = $region21
    $region20: #{tictactoe_net_forward.1} parent=1 // pred_region
      _
    $region21: #{tictactoe_net_forward.1} parent=1 // pred_fallthru
      _
    // Predicated region
    $region22: #{tictactoe_net_forward.1} parent=1 // pred_check
      _
    $region23: #{tictactoe_net_forward.1} parent=1 // pred_check_branch
      %24 = sbr.rel (0) target = $region25
    $region24: #{tictactoe_net_forward.1} parent=1 // pred_region
      _
    $region25: #{tictactoe_net_forward.1} parent=1 // pred_fallthru
      _
    // Predicated region
    $region26: #{tictactoe_net_forward.1} parent=1 // pred_check
      _
    $region27: #{tictactoe_net_forward.1} parent=1 // pred_check_branch
      %26 = sbr.rel (0) target = $region29
    $region28: #{tictactoe_net_forward.1} parent=1 // pred_region
      _
    $region29: #{tictactoe_net_forward.1} parent=1 // pred_fallthru
      _
    %v28 = vld [vmem:[%s0] sm:$0xf]
    %v29 = vld [vmem:[%s1] sm:$0xf]
    %v30 = vld [vmem:[%s1 + $0x4] sm:$0xf]
    %v31 = vld [vmem:[%s1 + $0x8] sm:$0xf]
    %v32 = vld [vmem:[%s1 + $0xc] sm:$0xf]
    %v33 = vld [vmem:[%s1 + $0x10] sm:$0xf]
    %v34 = vld [vmem:[%s1 + $0x14] sm:$0xf]
    %v35 = vld [vmem:[%s1 + $0x18] sm:$0xf]
    %v36 = vld [vmem:[%s1 + $0x1c] sm:$0xf]
    %v37 = vld [vmem:[%s1 + $0x20] sm:$0xf]
    %v38 = vld [vmem:[%s1 + $0x24] sm:$0xf]
    %v39 = vld [vmem:[%s1 + $0x28] sm:$0xf]
    %v40 = vld [vmem:[%s1 + $0x2c] sm:$0xf]
    %v41 = vld [vmem:[%s1 + $0x30] sm:$0x3]
    %v55 = vunpack.c.l.b16 %v29
    %v56 = vunpack.c.l.b16 %v30
    %v57 = vunpack.c.l.b16 %v31
    %v58 = vunpack.c.l.b16 %v32
    %v59 = vunpack.c.l.b16 %v33
    %v60 = vunpack.c.l.b16 %v34
    %v61 = vunpack.c.l.b16 %v35
    %v62 = vunpack.c.l.b16 %v36
    %v63 = vunpack.c.l.b16 %v37
    %v64 = vunpack.c.l.b16 %v38
    %v65 = vunpack.c.l.b16 %v39
    %v66 = vunpack.c.l.b16 %v40
    %v67 = vunpack.c.l.b16 %v41
    %v68 = vpack.c.b16 %v56, %v55
    %v69 = vpack.c.b16 %v58, %v57
    %v70 = vpack.c.b16 %v60, %v59
    %v71 = vpack.c.b16 %v62, %v61
    %v72 = vpack.c.b16 %v64, %v63
    %v73 = vpack.c.b16 %v66, %v65
    %v74 = vpack.c.b16 %v67, %v67
    %vm81 = vcmask 818176
    %v83 = vsel %vm81, %v28, 0
    %vm85 = vcmask 1041408
    %v87 = vsel %vm85, %v74, 0
    %89 = vmatprep.subr.bf16.mxu0 0
    %90 = vmatpush1.bf16.msra.mxu0 0
    %91 = vmatprep.subr.bf16.mxu0 0
    %92 = vmatpush1.bf16.msra.mxu0 %v87
    %93 = vmatprep.subr.bf16.mxu0 0
    %94 = vmatpush1.bf16.msra.mxu0 %v73
    %95 = vmatprep.subr.bf16.mxu0 0
    %96 = vmatpush1.bf16.msra.mxu0 %v72
    %97 = vmatprep.subr.bf16.mxu0 0
    %98 = vmatpush1.bf16.msra.mxu0 %v71
    %99 = vmatprep.subr.bf16.mxu0 0
    %100 = vmatpush1.bf16.msra.mxu0 %v70
    %101 = vmatprep.subr.bf16.mxu0 0
    %102 = vmatpush1.bf16.msra.mxu0 %v69
    %103 = vmatprep.subr.bf16.mxu0 0
    %104 = vmatpush1.bf16.msra.mxu0 %v68
    %105 = vmatprep.subr.bf16.mxu0 0
    %106 = vmatpush2.bf16.msra.mxu0 0
    %107 = vmatprep.subr.bf16.mxu0 0
    %108 = vmatpush2.bf16.msra.mxu0 0
    %109 = vmatprep.subr.bf16.mxu0 0
    %110 = vmatpush2.bf16.msra.mxu0 0
    %111 = vmatprep.subr.bf16.mxu0 0
    %112 = vmatpush2.bf16.msra.mxu0 0
    %113 = vmatprep.subr.bf16.mxu0 0
    %114 = vmatpush2.bf16.msra.mxu0 0
    %115 = vmatprep.subr.bf16.mxu0 0
    %116 = vmatpush2.bf16.msra.mxu0 0
    %117 = vmatprep.subr.bf16.mxu0 0
    %118 = vmatpush2.bf16.msra.mxu0 0
    %119 = vmatprep.subr.bf16.mxu0 0
    %120 = vmatpush2.bf16.msra.mxu0 0
    %121 = vmatprep.mubr.bf16.mxu0 0
    %122 = vmatmul.mubr.bf16.gmra.mxu0 %v83
    %v123 = vpop.f32.mrf.mxu0
    %v124 = vadd.f32 0.0, %v123
    %v125 = vpop.f32.mrf.mxu0
    %v126 = vpop.f32.mrf.mxu0
    %v127 = vpop.f32.mrf.mxu0
    %128 = vdwg.mxu0
    %v129 = vpack.c.bf16 %v124, %v124
    %v130 = vld [vmem:[%s2] sm:$0x1]
    %v132 = vpack.i.b16 %v130, %v130
    %v134 = vlaneseq
    %v135 = vshrl.u32 %v134, 7
    %v136 = vsub.s32 0, %v135
    %v137 = vrot.slane %v132, %v136
    %v138 = vadd.bf16 %v129, %v137
    %v139 = vmax.bf16 %v138, 0
    %v140 = vld [vmem:[%s3] sm:$0xf]
    %v141 = vld [vmem:[%s3 + $0x4] sm:$0xf]
    %v142 = vld [vmem:[%s3 + $0x8] sm:$0xf]
    %v143 = vld [vmem:[%s3 + $0xc] sm:$0xf]
    %v144 = vld [vmem:[%s3 + $0x10] sm:$0xf]
    %v145 = vld [vmem:[%s3 + $0x14] sm:$0xf]
    %v146 = vld [vmem:[%s3 + $0x18] sm:$0xf]
    %v147 = vld [vmem:[%s3 + $0x1c] sm:$0xf]
    %v148 = vld [vmem:[%s3 + $0x20] sm:$0xf]
    %v149 = vld [vmem:[%s3 + $0x24] sm:$0xf]
    %v150 = vld [vmem:[%s3 + $0x28] sm:$0xf]
    %v151 = vld [vmem:[%s3 + $0x2c] sm:$0xf]
    %v152 = vld [vmem:[%s3 + $0x30] sm:$0xf]
    %v153 = vld [vmem:[%s3 + $0x34] sm:$0xf]
    %v154 = vld [vmem:[%s3 + $0x38] sm:$0xf]
    %v155 = vld [vmem:[%s3 + $0x3c] sm:$0xf]
    %v172 = vunpack.c.l.b16 %v140
    %v173 = vunpack.c.l.b16 %v141
    %v174 = vunpack.c.l.b16 %v142
    %v175 = vunpack.c.l.b16 %v143
    %v176 = vunpack.c.l.b16 %v144
    %v177 = vunpack.c.l.b16 %v145
    %v178 = vunpack.c.l.b16 %v146
    %v179 = vunpack.c.l.b16 %v147
    %v180 = vunpack.c.l.b16 %v148
    %v181 = vunpack.c.l.b16 %v149
    %v182 = vunpack.c.l.b16 %v150
    %v183 = vunpack.c.l.b16 %v151
    %v184 = vunpack.c.l.b16 %v152
    %v185 = vunpack.c.l.b16 %v153
    %v186 = vunpack.c.l.b16 %v154
    %v187 = vunpack.c.l.b16 %v155
    %v188 = vpack.c.b16 %v173, %v172
    %v189 = vpack.c.b16 %v175, %v174
    %v190 = vpack.c.b16 %v177, %v176
    %v191 = vpack.c.b16 %v179, %v178
    %v192 = vpack.c.b16 %v181, %v180
    %v193 = vpack.c.b16 %v183, %v182
    %v194 = vpack.c.b16 %v185, %v184
    %v195 = vpack.c.b16 %v187, %v186
    %204 = vmatprep.subr.bf16.mxu0 0
    %205 = vmatpush1.bf16.msra.mxu0 %v195
    %206 = vmatprep.subr.bf16.mxu0 0
    %207 = vmatpush1.bf16.msra.mxu0 %v194
    %208 = vmatprep.subr.bf16.mxu0 0
    %209 = vmatpush1.bf16.msra.mxu0 %v193
    %210 = vmatprep.subr.bf16.mxu0 0
    %211 = vmatpush1.bf16.msra.mxu0 %v192
    %212 = vmatprep.subr.bf16.mxu0 0
    %213 = vmatpush1.bf16.msra.mxu0 %v191
    %214 = vmatprep.subr.bf16.mxu0 0
    %215 = vmatpush1.bf16.msra.mxu0 %v190
    %216 = vmatprep.subr.bf16.mxu0 0
    %217 = vmatpush1.bf16.msra.mxu0 %v189
    %218 = vmatprep.subr.bf16.mxu0 0
    %219 = vmatpush1.bf16.msra.mxu0 %v188
    %220 = vmatprep.subr.bf16.mxu0 0
    %221 = vmatpush2.bf16.msra.mxu0 0
    %222 = vmatprep.subr.bf16.mxu0 0
    %223 = vmatpush2.bf16.msra.mxu0 0
    %224 = vmatprep.subr.bf16.mxu0 0
    %225 = vmatpush2.bf16.msra.mxu0 0
    %226 = vmatprep.subr.bf16.mxu0 0
    %227 = vmatpush2.bf16.msra.mxu0 0
    %228 = vmatprep.subr.bf16.mxu0 0
    %229 = vmatpush2.bf16.msra.mxu0 0
    %230 = vmatprep.subr.bf16.mxu0 0
    %231 = vmatpush2.bf16.msra.mxu0 0
    %232 = vmatprep.subr.bf16.mxu0 0
    %233 = vmatpush2.bf16.msra.mxu0 0
    %234 = vmatprep.subr.bf16.mxu0 0
    %235 = vmatpush2.bf16.msra.mxu0 0
    %236 = vmatprep.mubr.bf16.mxu0 0
    %237 = vmatmul.mubr.bf16.gmra.mxu0 %v139
    %v238 = vpop.f32.mrf.mxu0
    %v239 = vadd.f32 0.0, %v238
    %v240 = vpop.f32.mrf.mxu0
    %v241 = vpop.f32.mrf.mxu0
    %v242 = vpop.f32.mrf.mxu0
    %243 = vdwg.mxu0
    %v244 = vpack.c.bf16 %v239, %v239
    %v245 = vld [vmem:[%s4] sm:$0x1]
    %v247 = vpack.i.b16 %v245, %v245
    %v249 = vlaneseq
    %v250 = vshrl.u32 %v249, 7
    %v251 = vsub.s32 0, %v250
    %v252 = vrot.slane %v247, %v251
    %v253 = vadd.bf16 %v244, %v252
    %v254 = vmax.bf16 %v253, 0
    %v255 = vld [vmem:[%s5] sm:$0xf]
    %v256 = vld [vmem:[%s5 + $0x4] sm:$0xf]
    %v257 = vld [vmem:[%s5 + $0x8] sm:$0xf]
    %v258 = vld [vmem:[%s5 + $0xc] sm:$0xf]
    %v259 = vld [vmem:[%s5 + $0x10] sm:$0xf]
    %v260 = vld [vmem:[%s5 + $0x14] sm:$0xf]
    %v261 = vld [vmem:[%s5 + $0x18] sm:$0xf]
    %v262 = vld [vmem:[%s5 + $0x1c] sm:$0xf]
    %v263 = vld [vmem:[%s5 + $0x20] sm:$0xf]
    %v264 = vld [vmem:[%s5 + $0x24] sm:$0xf]
    %v265 = vld [vmem:[%s5 + $0x28] sm:$0xf]
    %v266 = vld [vmem:[%s5 + $0x2c] sm:$0xf]
    %v267 = vld [vmem:[%s5 + $0x30] sm:$0xf]
    %v268 = vld [vmem:[%s5 + $0x34] sm:$0xf]
    %v269 = vld [vmem:[%s5 + $0x38] sm:$0xf]
    %v270 = vld [vmem:[%s5 + $0x3c] sm:$0xf]
    %v271 = vld [vmem:[%s6] sm:$0x1]
    %v273 = vlaneseq
    %v274 = vshrl.u32 %v273, 7
    %v275 = vsub.s32 0, %v274
    %v276 = vrot.slane %v271, %v275
    %v294 = vunpack.c.l.b16 %v255
    %v295 = vunpack.c.l.b16 %v256
    %v296 = vunpack.c.l.b16 %v257
    %v297 = vunpack.c.l.b16 %v258
    %v298 = vunpack.c.l.b16 %v259
    %v299 = vunpack.c.l.b16 %v260
    %v300 = vunpack.c.l.b16 %v261
    %v301 = vunpack.c.l.b16 %v262
    %v302 = vunpack.c.l.b16 %v263
    %v303 = vunpack.c.l.b16 %v264
    %v304 = vunpack.c.l.b16 %v265
    %v305 = vunpack.c.l.b16 %v266
    %v306 = vunpack.c.l.b16 %v267
    %v307 = vunpack.c.l.b16 %v268
    %v308 = vunpack.c.l.b16 %v269
    %v309 = vunpack.c.l.b16 %v270
    %v310 = vpack.c.b16 %v295, %v294
    %v311 = vpack.c.b16 %v297, %v296
    %v312 = vpack.c.b16 %v299, %v298
    %v313 = vpack.c.b16 %v301, %v300
    %v314 = vpack.c.b16 %v303, %v302
    %v315 = vpack.c.b16 %v305, %v304
    %v316 = vpack.c.b16 %v307, %v306
    %v317 = vpack.c.b16 %v309, %v308
    %326 = vmatprep.subr.bf16.mxu0 0
    %327 = vmatpush1.bf16.msra.mxu0 %v317
    %328 = vmatprep.subr.bf16.mxu0 0
    %329 = vmatpush1.bf16.msra.mxu0 %v316
    %330 = vmatprep.subr.bf16.mxu0 0
    %331 = vmatpush1.bf16.msra.mxu0 %v315
    %332 = vmatprep.subr.bf16.mxu0 0
    %333 = vmatpush1.bf16.msra.mxu0 %v314
    %334 = vmatprep.subr.bf16.mxu0 0
    %335 = vmatpush1.bf16.msra.mxu0 %v313
    %336 = vmatprep.subr.bf16.mxu0 0
    %337 = vmatpush1.bf16.msra.mxu0 %v312
    %338 = vmatprep.subr.bf16.mxu0 0
    %339 = vmatpush1.bf16.msra.mxu0 %v311
    %340 = vmatprep.subr.bf16.mxu0 0
    %341 = vmatpush1.bf16.msra.mxu0 %v310
    %342 = vmatprep.subr.bf16.mxu0 0
    %343 = vmatpush2.bf16.msra.mxu0 0
    %344 = vmatprep.subr.bf16.mxu0 0
    %345 = vmatpush2.bf16.msra.mxu0 0
    %346 = vmatprep.subr.bf16.mxu0 0
    %347 = vmatpush2.bf16.msra.mxu0 0
    %348 = vmatprep.subr.bf16.mxu0 0
    %349 = vmatpush2.bf16.msra.mxu0 0
    %350 = vmatprep.subr.bf16.mxu0 0
    %351 = vmatpush2.bf16.msra.mxu0 0
    %352 = vmatprep.subr.bf16.mxu0 0
    %353 = vmatpush2.bf16.msra.mxu0 0
    %354 = vmatprep.subr.bf16.mxu0 0
    %355 = vmatpush2.bf16.msra.mxu0 0
    %356 = vmatprep.subr.bf16.mxu0 0
    %357 = vmatpush2.bf16.msra.mxu0 0
    %358 = vmatprep.mubr.bf16.mxu0 0
    %359 = vmatmul.mubr.bf16.gmra.mxu0 %v254
    %v360 = vpop.f32.mrf.mxu0
    %v361 = vadd.f32 %v276, %v360
    %v362 = vpop.f32.mrf.mxu0
    %v363 = vpop.f32.mrf.mxu0
    %v364 = vpop.f32.mrf.mxu0
    %365 = vdwg.mxu0
    %366 = vst.msk [vmem:[#allocation2] sm:$0xff] %vm81, %v361
    // Predicated region
    $region30: #{tictactoe_net_forward.1} parent=1 // pred_check
      _
    $region31: #{tictactoe_net_forward.1} parent=1 // pred_check_branch
      %368 = sbr.rel (0) target = $region33
    $region32: #{tictactoe_net_forward.1} parent=1 // pred_region
      %s370 = ssub.s32 128, 128
      %371 = vsyncadd [#allocation3], %s370
      %s373 = sshll.u32 [#allocation2], 4
      %s374 = int_to_ptr.vmem [resolvable:$true] %s373
      %376 = dma.vmem_to_hbm [thread:$0]  %s374, 128, %s7, [#allocation3]
    $region33: #{tictactoe_net_forward.1} parent=1 // pred_fallthru
      _
    // Predicated region
    $region34: #{tictactoe_net_forward.1} parent=1 // pred_check
      _
    $region35: #{tictactoe_net_forward.1} parent=1 // pred_check_branch
      %378 = sbr.rel (0) target = $region37
    $region36: #{tictactoe_net_forward.1} parent=1 // pred_region
      %379 = dma.done [#allocation3], 128
    $region37: #{tictactoe_net_forward.1} parent=1 // pred_fallthru
      _
    %380 = vsyncpa [#allocation3], 1

</llo_original>
